<compile_context>
chip_gen: v5e
topology: v5e:2x2
jax: 0.10.0
libtpu: 0.0.40
codegen_flags: <defaults>
</compile_context>

<pallas_src>
import functools
from typing import NamedTuple

import jax
import jax.numpy as jnp
from jax.experimental import pallas as pl
from jax.experimental.pallas import tpu as pltpu

LANE = 128
BATCH_GRANULE = 16          # bf16 packs 16 rows per sublane group (also ok for f32)
MAX_BLOCK_BATCH = 1024      # mem-bound tile sweeps saturate around 512-1024 rows
VMEM_TILE_BUDGET = 40 << 20  # keep comfortably under v7x's 64 MiB physical VMEM


def _round_up(x, m):
    return (x + m - 1) // m * m


# ----------------------------------------------------------------------------
# Kernel
# ----------------------------------------------------------------------------
def clas_prior_kernel(x_ref, w1_ref, b1_ref, w2_ref, b2_ref, wh_ref, bh_ref,
                      out_ref, *, latent_dim):
    """Fused 2-layer ReLU MLP + (mu | logvar) head for one batch tile."""
    # Cast the input to the compute dtype in-kernel (no wrapper HBM pass).
    x = x_ref[...].astype(w1_ref.dtype)
    # hidden = ReLU(x @ W1 + b1)   (f32 accumulation on the MXU)
    h = jnp.dot(x, w1_ref[...], preferred_element_type=jnp.float32)
    h = jnp.maximum(h + b1_ref[...], 0.0)
    # hidden = ReLU(h @ W2 + b2)
    h = jnp.dot(h.astype(w2_ref.dtype), w2_ref[...],
                preferred_element_type=jnp.float32)
    h = jnp.maximum(h + b2_ref[...], 0.0)
    # fused heads: [mu | logvar | pad] = h @ [Wmu | Wlv | 0] + [bmu | blv | 0]
    head = jnp.dot(h.astype(wh_ref.dtype), wh_ref[...],
                   preferred_element_type=jnp.float32) + bh_ref[...]
    # clamp only the logvar columns to [-10, 2]
    col = jax.lax.broadcasted_iota(jnp.int32, head.shape, 1)
    is_logvar = (col >= latent_dim) & (col < 2 * latent_dim)
    head = jnp.where(is_logvar, jnp.clip(head, -10.0, 2.0), head)
    out_ref[...] = head.astype(out_ref.dtype)


# ----------------------------------------------------------------------------
# One-time parameter preparation (fuse heads, lane-pad, cast)
# ----------------------------------------------------------------------------
class PreparedCLASPriorParams(NamedTuple):
    w1: jax.Array   # (obs_dim, hid_p)        compute dtype
    b1: jax.Array   # (1, hid_p)              f32
    w2: jax.Array   # (hid_p, hid_p)          compute dtype
    b2: jax.Array   # (1, hid_p)              f32
    wh: jax.Array   # (hid_p, head_p)  [Wmu|Wlv|0]  compute dtype
    bh: jax.Array   # (1, head_p)      [bmu|blv|0]  f32
    obs_dim: int
    latent_dim: int
    hidden_dim: int


def prepare_clas_prior_params(params, *, compute_dtype=jnp.bfloat16):
    """Fuse/pad/cast the CLASPrior parameters once (per parameter update).

    compute_dtype=jnp.bfloat16 is recommended on v5e/v6e/v7x (bf16-native MXU,
    half the resident weight VMEM and weight DMA); accumulation stays f32.
    """
    w1, b1, w2, b2, wmu, bmu, wlv, blv = params
    obs_dim, hidden_dim = w1.shape
    latent_dim = wmu.shape[1]

    # Fuse the two heads into one matmul: [Wmu | Wlv], [bmu | blv].
    w_head = jnp.concatenate([wmu, wlv], axis=1)
    b_head = jnp.concatenate([bmu, blv], axis=1)

    # Zero-pad feature dims to the 128-lane width: full MXU tiles and unmasked
    # lane-dense stores.  Padded units have zero weight/bias -> exact result.
    hid_p = _round_up(hidden_dim, LANE)
    head_p = _round_up(2 * latent_dim, LANE)
    w1p = jnp.pad(w1, ((0, 0), (0, hid_p - hidden_dim)))
    b1p = jnp.pad(b1, ((0, 0), (0, hid_p - hidden_dim)))
    w2p = jnp.pad(w2, ((0, hid_p - hidden_dim), (0, hid_p - hidden_dim)))
    b2p = jnp.pad(b2, ((0, 0), (0, hid_p - hidden_dim)))
    whp = jnp.pad(w_head, ((0, hid_p - hidden_dim), (0, head_p - 2 * latent_dim)))
    bhp = jnp.pad(b_head, ((0, 0), (0, head_p - 2 * latent_dim)))

    # Weights in the compute dtype; biases stay f32 (added to f32 accumulators).
    w1p = w1p.astype(compute_dtype)
    w2p = w2p.astype(compute_dtype)
    whp = whp.astype(compute_dtype)
    b1p = b1p.astype(jnp.float32)
    b2p = b2p.astype(jnp.float32)
    bhp = bhp.astype(jnp.float32)

    return PreparedCLASPriorParams(w1p, b1p, w2p, b2p, whp, bhp,
                                   obs_dim, latent_dim, hidden_dim)


# ----------------------------------------------------------------------------
# Forward
# ----------------------------------------------------------------------------
def clas_prior_forward(obs, prepared, *, block_batch=None, out_dtype=None,
                       single_buffer_weights=True, vmem_limit_bytes=None):
    """Fused CLASPrior forward.

    obs: (B, obs_dim) float32.  prepared: PreparedCLASPriorParams.
    Returns (mu, logvar), each (B, latent_dim) in `out_dtype`
    (default: bf16 on the bf16 compute path, f32 on the f32 path).
    """
    B, obs_dim = obs.shape
    assert obs_dim == prepared.obs_dim, "obs feature dim mismatch"
    latent_dim = prepared.latent_dim
    hid_p = prepared.w1.shape[1]
    head_p = prepared.wh.shape[1]
    compute_dtype = prepared.w1.dtype

    if out_dtype is None:
        # bf16 output halves the dominant lane-padded output HBM stream.
        out_dtype = jnp.bfloat16 if compute_dtype == jnp.bfloat16 else jnp.float32

    # --- batch tiling: big tiles amortize the ~0.35us per-grid-step overhead
    #     and keep HBM streaming near roofline; aim for >=2 grid steps at
    #     moderate B so ("parallel",) shards across v7x's two TensorCores. ---
    if block_batch is None:
        if B <= BATCH_GRANULE:
            block_batch = BATCH_GRANULE
        elif B <= 2 * MAX_BLOCK_BATCH:
            block_batch = _round_up(pl.cdiv(B, 2), BATCH_GRANULE)
        else:
            block_batch = MAX_BLOCK_BATCH
    block_batch = max(BATCH_GRANULE, _round_up(block_batch, BATCH_GRANULE))

    # --- explicit VMEM budgeting (v7x: 64 MiB physical / 32 MiB default scoped;
    #     v5e: 16 MiB default scoped).  Shrink block_batch if it would not fit. ---
    w_bytes = jnp.dtype(compute_dtype).itemsize
    out_bytes = jnp.dtype(out_dtype).itemsize
    in_bytes = jnp.dtype(obs.dtype).itemsize
    weight_elems = obs_dim * hid_p + hid_p * hid_p + hid_p * head_p
    bias_elems = 2 * hid_p + head_p
    w_bufs = 1 if single_buffer_weights else 2

    def tile_budget(bb):
        weights = weight_elems * w_bytes * w_bufs + bias_elems * 4 * w_bufs
        io = 2 * bb * (obs_dim * in_bytes + head_p * out_bytes)       # dbl-buffered x/out
        temps = bb * hid_p * (4 + w_bytes) * 2                        # f32 acts + casts
        return weights + io + temps

    while tile_budget(block_batch) > VMEM_TILE_BUDGET and block_batch > BATCH_GRANULE:
        block_batch = max(BATCH_GRANULE, _round_up(block_batch // 2, BATCH_GRANULE))

    grid_b = pl.cdiv(B, block_batch)
    b_pad = grid_b * block_batch
    x = obs if b_pad == B else jnp.pad(obs, ((0, b_pad - B), (0, 0)))

    if vmem_limit_bytes is None:
        vmem_limit_bytes = min(max(int(tile_budget(block_batch) * 1.25) + (2 << 20),
                                   16 << 20), 48 << 20)

    cost = pl.CostEstimate(
        flops=2 * b_pad * weight_elems,
        transcendentals=0,
        bytes_accessed=(weight_elems * w_bytes + bias_elems * 4
                        + b_pad * (obs_dim * in_bytes + head_p * out_bytes)),
    )

    def _run(single_buf):
        def resident(shape):
            # Weights/biases are fully resident (constant block index); a
            # single buffer avoids allocating 2x their footprint in VMEM.
            if single_buf:
                return pl.BlockSpec(shape, lambda i: (0, 0),
                                    pipeline_mode=pl.Buffered(1))
            return pl.BlockSpec(shape, lambda i: (0, 0))

        return pl.pallas_call(
            functools.partial(clas_prior_kernel, latent_dim=latent_dim),
            out_shape=jax.ShapeDtypeStruct((b_pad, head_p), out_dtype),
            grid_spec=pltpu.PrefetchScalarGridSpec(
                num_scalar_prefetch=0,
                grid=(grid_b,),
                in_specs=[
                    pl.BlockSpec((block_batch, obs_dim), lambda i: (i, 0)),  # obs tile
                    resident((obs_dim, hid_p)),    # W1 (padded)
                    resident((1, hid_p)),          # b1
                    resident((hid_p, hid_p)),      # W2 (padded)
                    resident((1, hid_p)),          # b2
                    resident((hid_p, head_p)),     # [Wmu | Wlv | 0]
                    resident((1, head_p)),         # [bmu | blv | 0]
                ],
                out_specs=pl.BlockSpec((block_batch, head_p), lambda i: (i, 0)),
            ),
            compiler_params=pltpu.CompilerParams(
                dimension_semantics=("parallel",),
                vmem_limit_bytes=vmem_limit_bytes),
            cost_estimate=cost,
        )(x, prepared.w1, prepared.b1, prepared.w2, prepared.b2,
          prepared.wh, prepared.bh)

    if single_buffer_weights:
        try:
            out = _run(True)
        except Exception:  # pragma: no cover - fallback if Buffered(1) unsupported
            out = _run(False)
    else:
        out = _run(False)

    mu = out[:B, :latent_dim]
    logvar = out[:B, latent_dim:2 * latent_dim]
    return mu, logvar


# ----------------------------------------------------------------------------
# Synthetic init + pure-JAX reference (mirrors the PyTorch module)
# ----------------------------------------------------------------------------
def init_params(key, obs_dim, latent_dim, hidden_dim):
    """nn.Linear defaults; logvar bias constant -5.0.  Weights (in, out)."""
    k1, k2, k3, k4 = jax.random.split(key, 4)

    def lin(k, fan_in, fan_out):
        bound = 1.0 / jnp.sqrt(fan_in)
        kw, kb = jax.random.split(k)
        w = jax.random.uniform(kw, (fan_in, fan_out), jnp.float32, -bound, bound)
        b = jax.random.uniform(kb, (1, fan_out), jnp.float32, -bound, bound)
        return w, b

    w1, b1 = lin(k1, obs_dim, hidden_dim)
    w2, b2 = lin(k2, hidden_dim, hidden_dim)
    wmu, bmu = lin(k3, hidden_dim, latent_dim)
    wlv, _ = lin(k4, hidden_dim, latent_dim)
    blv = jnp.full((1, latent_dim), -5.0, jnp.float32)  # nn.init.constant_(bias, -5.0)
    return (w1, b1, w2, b2, wmu, bmu, wlv, blv)


def reference_forward(obs, params):
    w1, b1, w2, b2, wmu, bmu, wlv, blv = params
    h = jnp.maximum(obs @ w1 + b1, 0.0)
    h = jnp.maximum(h @ w2 + b2, 0.0)
    mu = h @ wmu + bmu
    logvar = jnp.clip(h @ wlv + blv, -10.0, 2.0)
    return mu, logvar


if __name__ == "__main__":
    # Small, deliberately non-aligned shapes to exercise lane padding and the
    # cdiv / zero-padded batch tail.
    B, obs_dim, latent_dim, hidden_dim = 12, 20, 6, 64

    key = jax.random.PRNGKey(0)
    k_obs, k_params, k_obs2 = jax.random.split(key, 3)
    obs = jax.random.normal(k_obs, (B, obs_dim), jnp.float32)
    params = init_params(k_params, obs_dim, latent_dim, hidden_dim)
    mu_ref, logvar_ref = reference_forward(obs, params)

    # f32 compute path: matches the reference tightly.
    prep_f32 = prepare_clas_prior_params(params, compute_dtype=jnp.float32)
    mu, logvar = clas_prior_forward(obs, prep_f32)
    jax.block_until_ready((mu, logvar))
    assert mu.shape == (B, latent_dim) and logvar.shape == (B, latent_dim)
    assert mu.dtype == jnp.float32
    assert jnp.allclose(mu, mu_ref, atol=1e-4, rtol=1e-4)
    assert jnp.allclose(logvar, logvar_ref, atol=1e-4, rtol=1e-4)

    # bf16 compute path (recommended default): bf16 weights + bf16 output,
    # f32 MXU accumulation.  Loose tolerance vs f32 reference.
    prep_bf16 = prepare_clas_prior_params(params)  # compute_dtype=bf16 default
    mu_bf, logvar_bf = clas_prior_forward(obs, prep_bf16)
    jax.block_until_ready((mu_bf, logvar_bf))
    assert mu_bf.dtype == jnp.bfloat16
    assert jnp.allclose(mu_bf.astype(jnp.float32), mu_ref, atol=1e-1, rtol=1e-1)
    assert jnp.allclose(logvar_bf.astype(jnp.float32), logvar_ref, atol=1e-1, rtol=1e-1)

    # Larger non-aligned batch: exercises grid_b >= 2 (two batch tiles) and the
    # zero-padded tail, with f32 output requested from the bf16 compute path.
    B2 = 300
    obs2 = jax.random.normal(k_obs2, (B2, obs_dim), jnp.float32)
    mu2_ref, logvar2_ref = reference_forward(obs2, params)
    mu2, logvar2 = clas_prior_forward(obs2, prep_bf16, out_dtype=jnp.float32)
    jax.block_until_ready((mu2, logvar2))
    assert mu2.shape == (B2, latent_dim) and logvar2.shape == (B2, latent_dim)
    assert jnp.allclose(mu2, mu2_ref, atol=1e-1, rtol=1e-1)
    assert jnp.allclose(logvar2, logvar2_ref, atol=1e-1, rtol=1e-1)

    print("KERNEL_OK")
</pallas_src>

<mosaic_0001>
module attributes {stable_mosaic.version = 11 : i64} {
  func.func @clas_prior_kernel(%arg0: i32, %arg1: memref<16x20xf32, #tpu.memory_space<vmem>>, %arg2: memref<20x128xf32, #tpu.memory_space<vmem>>, %arg3: memref<1x128xf32, #tpu.memory_space<vmem>>, %arg4: memref<128x128xf32, #tpu.memory_space<vmem>>, %arg5: memref<1x128xf32, #tpu.memory_space<vmem>>, %arg6: memref<128x128xf32, #tpu.memory_space<vmem>>, %arg7: memref<1x128xf32, #tpu.memory_space<vmem>>, %arg8: memref<16x128xf32, #tpu.memory_space<vmem>>) attributes {dimension_semantics = [#tpu.dimension_semantics<parallel>], iteration_bounds = array<i64: 1>, scalar_prefetch = 0 : i64, scratch_operands = 0 : i64, tpu.core_type = #tpu.core_type<tc>, window_params = [{transform_indices = @transform_0, window_bounds = array<i64: 16, 20>}, {pipeline_mode = #tpu.pipeline_mode<synchronous>, transform_indices = @transform_1, window_bounds = array<i64: 20, 128>}, {pipeline_mode = #tpu.pipeline_mode<synchronous>, transform_indices = @transform_2, window_bounds = array<i64: 1, 128>}, {pipeline_mode = #tpu.pipeline_mode<synchronous>, transform_indices = @transform_3, window_bounds = array<i64: 128, 128>}, {pipeline_mode = #tpu.pipeline_mode<synchronous>, transform_indices = @transform_4, window_bounds = array<i64: 1, 128>}, {pipeline_mode = #tpu.pipeline_mode<synchronous>, transform_indices = @transform_5, window_bounds = array<i64: 128, 128>}, {pipeline_mode = #tpu.pipeline_mode<synchronous>, transform_indices = @transform_6, window_bounds = array<i64: 1, 128>}, {transform_indices = @transform_7, window_bounds = array<i64: 16, 128>}]} {
    %c0 = arith.constant 0 : index
    %c0_0 = arith.constant 0 : index
    %0 = vector.load %arg1[%c0, %c0_0] : memref<16x20xf32, #tpu.memory_space<vmem>>, vector<16x20xf32>
    %c0_1 = arith.constant 0 : index
    %c0_2 = arith.constant 0 : index
    %1 = vector.load %arg2[%c0_1, %c0_2] : memref<20x128xf32, #tpu.memory_space<vmem>>, vector<20x128xf32>
    %cst = arith.constant dense<0.000000e+00> : vector<16x128xf32>
    %2 = tpu.matmul %0, %1, %cst {dimension_numbers = #tpu.dot_dimension_numbers<[1], [0], [0], [1], [0, 0, 1, 1], [], []>} : vector<16x20xf32>, vector<20x128xf32>, vector<16x128xf32> -> vector<16x128xf32>
    %c0_3 = arith.constant 0 : index
    %c0_4 = arith.constant 0 : index
    %3 = vector.load %arg3[%c0_3, %c0_4] : memref<1x128xf32, #tpu.memory_space<vmem>>, vector<1x128xf32>
    %4 = vector.broadcast %3 : vector<1x128xf32> to vector<16x128xf32>
    %5 = arith.addf %2, %4 : vector<16x128xf32>
    %cst_5 = arith.constant 0.000000e+00 : f32
    %6 = vector.broadcast %cst_5 : f32 to vector<16x128xf32>
    %7 = arith.maximumf %5, %6 : vector<16x128xf32>
    %c0_6 = arith.constant 0 : index
    %c0_7 = arith.constant 0 : index
    %8 = vector.load %arg4[%c0_6, %c0_7] : memref<128x128xf32, #tpu.memory_space<vmem>>, vector<128x128xf32>
    %cst_8 = arith.constant dense<0.000000e+00> : vector<16x128xf32>
    %9 = tpu.matmul %7, %8, %cst_8 {dimension_numbers = #tpu.dot_dimension_numbers<[1], [0], [0], [1], [0, 0, 1, 1], [], []>} : vector<16x128xf32>, vector<128x128xf32>, vector<16x128xf32> -> vector<16x128xf32>
    %c0_9 = arith.constant 0 : index
    %c0_10 = arith.constant 0 : index
    %10 = vector.load %arg5[%c0_9, %c0_10] : memref<1x128xf32, #tpu.memory_space<vmem>>, vector<1x128xf32>
    %11 = vector.broadcast %10 : vector<1x128xf32> to vector<16x128xf32>
    %12 = arith.addf %9, %11 : vector<16x128xf32>
    %cst_11 = arith.constant 0.000000e+00 : f32
    %13 = vector.broadcast %cst_11 : f32 to vector<16x128xf32>
    %14 = arith.maximumf %12, %13 : vector<16x128xf32>
    %c0_12 = arith.constant 0 : index
    %c0_13 = arith.constant 0 : index
    %15 = vector.load %arg6[%c0_12, %c0_13] : memref<128x128xf32, #tpu.memory_space<vmem>>, vector<128x128xf32>
    %cst_14 = arith.constant dense<0.000000e+00> : vector<16x128xf32>
    %16 = tpu.matmul %14, %15, %cst_14 {dimension_numbers = #tpu.dot_dimension_numbers<[1], [0], [0], [1], [0, 0, 1, 1], [], []>} : vector<16x128xf32>, vector<128x128xf32>, vector<16x128xf32> -> vector<16x128xf32>
    %c0_15 = arith.constant 0 : index
    %c0_16 = arith.constant 0 : index
    %17 = vector.load %arg7[%c0_15, %c0_16] : memref<1x128xf32, #tpu.memory_space<vmem>>, vector<1x128xf32>
    %18 = vector.broadcast %17 : vector<1x128xf32> to vector<16x128xf32>
    %19 = arith.addf %16, %18 : vector<16x128xf32>
    %20 = tpu.iota {dimensions = array<i32: 1>} : vector<16x128xi32>
    %c6_i32 = arith.constant 6 : i32
    %21 = vector.broadcast %c6_i32 : i32 to vector<16x128xi32>
    %22 = arith.cmpi sge, %20, %21 : vector<16x128xi32>
    %c12_i32 = arith.constant 12 : i32
    %23 = vector.broadcast %c12_i32 : i32 to vector<16x128xi32>
    %24 = arith.cmpi slt, %20, %23 : vector<16x128xi32>
    %25 = arith.andi %22, %24 : vector<16x128xi1>
    %cst_17 = arith.constant -1.000000e+01 : f32
    %cst_18 = arith.constant 2.000000e+00 : f32
    %26 = vector.broadcast %cst_17 : f32 to vector<16x128xf32>
    %27 = arith.maximumf %26, %19 : vector<16x128xf32>
    %28 = vector.broadcast %cst_18 : f32 to vector<16x128xf32>
    %29 = arith.minimumf %28, %27 : vector<16x128xf32>
    %30 = arith.select %25, %29, %19 : vector<16x128xi1>, vector<16x128xf32>
    %c0_19 = arith.constant 0 : index
    %c0_20 = arith.constant 0 : index
    %31 = vector.load %arg8[%c0_19, %c0_20] : memref<16x128xf32, #tpu.memory_space<vmem>>, vector<16x128xf32>
    tpu.vector_store %arg8[%c0_19, %c0_20], %30 {strides = array<i32>} : memref<16x128xf32, #tpu.memory_space<vmem>>, vector<16x128xf32>,
    return
  }
  func.func @transform_0(%arg0: i32) -> (i32, i32) {
    %c0_i32 = arith.constant 0 : i32
    %c0_i32_0 = arith.constant 0 : i32
    return %arg0, %c0_i32 : i32, i32
  }
  func.func @transform_1(%arg0: i32) -> (i32, i32) {
    %c0_i32 = arith.constant 0 : i32
    %c0_i32_0 = arith.constant 0 : i32
    %c0_i32_1 = arith.constant 0 : i32
    return %c0_i32, %c0_i32_0 : i32, i32
  }
  func.func @transform_2(%arg0: i32) -> (i32, i32) {
    %c0_i32 = arith.constant 0 : i32
    %c0_i32_0 = arith.constant 0 : i32
    %c0_i32_1 = arith.constant 0 : i32
    return %c0_i32, %c0_i32_0 : i32, i32
  }
  func.func @transform_3(%arg0: i32) -> (i32, i32) {
    %c0_i32 = arith.constant 0 : i32
    %c0_i32_0 = arith.constant 0 : i32
    %c0_i32_1 = arith.constant 0 : i32
    return %c0_i32, %c0_i32_0 : i32, i32
  }
  func.func @transform_4(%arg0: i32) -> (i32, i32) {
    %c0_i32 = arith.constant 0 : i32
    %c0_i32_0 = arith.constant 0 : i32
    %c0_i32_1 = arith.constant 0 : i32
    return %c0_i32, %c0_i32_0 : i32, i32
  }
  func.func @transform_5(%arg0: i32) -> (i32, i32) {
    %c0_i32 = arith.constant 0 : i32
    %c0_i32_0 = arith.constant 0 : i32
    %c0_i32_1 = arith.constant 0 : i32
    return %c0_i32, %c0_i32_0 : i32, i32
  }
  func.func @transform_6(%arg0: i32) -> (i32, i32) {
    %c0_i32 = arith.constant 0 : i32
    %c0_i32_0 = arith.constant 0 : i32
    %c0_i32_1 = arith.constant 0 : i32
    return %c0_i32, %c0_i32_0 : i32, i32
  }
  func.func @transform_7(%arg0: i32) -> (i32, i32) {
    %c0_i32 = arith.constant 0 : i32
    %c0_i32_0 = arith.constant 0 : i32
    return %arg0, %c0_i32 : i32, i32
  }
}

module attributes {stable_mosaic.version = 11 : i64} {
  func.func @clas_prior_kernel(%arg0: i32, %arg1: memref<16x20xf32, #tpu.memory_space<vmem>>, %arg2: memref<20x128xf32, #tpu.memory_space<vmem>>, %arg3: memref<1x128xf32, #tpu.memory_space<vmem>>, %arg4: memref<128x128xf32, #tpu.memory_space<vmem>>, %arg5: memref<1x128xf32, #tpu.memory_space<vmem>>, %arg6: memref<128x128xf32, #tpu.memory_space<vmem>>, %arg7: memref<1x128xf32, #tpu.memory_space<vmem>>, %arg8: memref<16x128xf32, #tpu.memory_space<vmem>>) attributes {dimension_semantics = [#tpu.dimension_semantics<parallel>], iteration_bounds = array<i64: 1>, scalar_prefetch = 0 : i64, scratch_operands = 0 : i64, tpu.core_type = #tpu.core_type<tc>, window_params = [{transform_indices = @transform_0, window_bounds = array<i64: 16, 20>}, {pipeline_mode = #tpu.pipeline_mode<synchronous>, transform_indices = @transform_1, window_bounds = array<i64: 20, 128>}, {pipeline_mode = #tpu.pipeline_mode<synchronous>, transform_indices = @transform_2, window_bounds = array<i64: 1, 128>}, {pipeline_mode = #tpu.pipeline_mode<synchronous>, transform_indices = @transform_3, window_bounds = array<i64: 128, 128>}, {pipeline_mode = #tpu.pipeline_mode<synchronous>, transform_indices = @transform_4, window_bounds = array<i64: 1, 128>}, {pipeline_mode = #tpu.pipeline_mode<synchronous>, transform_indices = @transform_5, window_bounds = array<i64: 128, 128>}, {pipeline_mode = #tpu.pipeline_mode<synchronous>, transform_indices = @transform_6, window_bounds = array<i64: 1, 128>}, {transform_indices = @transform_7, window_bounds = array<i64: 16, 128>}]} {
    %c0 = arith.constant 0 : index
    %c0_0 = arith.constant 0 : index
    %0 = vector.load %arg1[%c0, %c0_0] : memref<16x20xf32, #tpu.memory_space<vmem>>, vector<16x20xf32>
    %c0_1 = arith.constant 0 : index
    %c0_2 = arith.constant 0 : index
    %1 = vector.load %arg2[%c0_1, %c0_2] : memref<20x128xf32, #tpu.memory_space<vmem>>, vector<20x128xf32>
    %cst = arith.constant dense<0.000000e+00> : vector<16x128xf32>
    %2 = tpu.matmul %0, %1, %cst {dimension_numbers = #tpu.dot_dimension_numbers<[1], [0], [0], [1], [0, 0, 1, 1], [], []>} : vector<16x20xf32>, vector<20x128xf32>, vector<16x128xf32> -> vector<16x128xf32>
    %c0_3 = arith.constant 0 : index
    %c0_4 = arith.constant 0 : index
    %3 = vector.load %arg3[%c0_3, %c0_4] : memref<1x128xf32, #tpu.memory_space<vmem>>, vector<1x128xf32>
    %4 = vector.broadcast %3 : vector<1x128xf32> to vector<16x128xf32>
    %5 = arith.addf %2, %4 : vector<16x128xf32>
    %cst_5 = arith.constant 0.000000e+00 : f32
    %6 = vector.broadcast %cst_5 : f32 to vector<16x128xf32>
    %7 = arith.maximumf %5, %6 : vector<16x128xf32>
    %c0_6 = arith.constant 0 : index
    %c0_7 = arith.constant 0 : index
    %8 = vector.load %arg4[%c0_6, %c0_7] : memref<128x128xf32, #tpu.memory_space<vmem>>, vector<128x128xf32>
    %cst_8 = arith.constant dense<0.000000e+00> : vector<16x128xf32>
    %9 = tpu.matmul %7, %8, %cst_8 {dimension_numbers = #tpu.dot_dimension_numbers<[1], [0], [0], [1], [0, 0, 1, 1], [], []>} : vector<16x128xf32>, vector<128x128xf32>, vector<16x128xf32> -> vector<16x128xf32>
    %c0_9 = arith.constant 0 : index
    %c0_10 = arith.constant 0 : index
    %10 = vector.load %arg5[%c0_9, %c0_10] : memref<1x128xf32, #tpu.memory_space<vmem>>, vector<1x128xf32>
    %11 = vector.broadcast %10 : vector<1x128xf32> to vector<16x128xf32>
    %12 = arith.addf %9, %11 : vector<16x128xf32>
    %cst_11 = arith.constant 0.000000e+00 : f32
    %13 = vector.broadcast %cst_11 : f32 to vector<16x128xf32>
    %14 = arith.maximumf %12, %13 : vector<16x128xf32>
    %c0_12 = arith.constant 0 : index
    %c0_13 = arith.constant 0 : index
    %15 = vector.load %arg6[%c0_12, %c0_13] : memref<128x128xf32, #tpu.memory_space<vmem>>, vector<128x128xf32>
    %cst_14 = arith.constant dense<0.000000e+00> : vector<16x128xf32>
    %16 = tpu.matmul %14, %15, %cst_14 {dimension_numbers = #tpu.dot_dimension_numbers<[1], [0], [0], [1], [0, 0, 1, 1], [], []>} : vector<16x128xf32>, vector<128x128xf32>, vector<16x128xf32> -> vector<16x128xf32>
    %c0_15 = arith.constant 0 : index
    %c0_16 = arith.constant 0 : index
    %17 = vector.load %arg7[%c0_15, %c0_16] : memref<1x128xf32, #tpu.memory_space<vmem>>, vector<1x128xf32>
    %18 = vector.broadcast %17 : vector<1x128xf32> to vector<16x128xf32>
    %19 = arith.addf %16, %18 : vector<16x128xf32>
    %20 = tpu.iota {dimensions = array<i32: 1>} : vector<16x128xi32>
    %c6_i32 = arith.constant 6 : i32
    %21 = vector.broadcast %c6_i32 : i32 to vector<16x128xi32>
    %22 = arith.cmpi sge, %20, %21 : vector<16x128xi32>
    %c12_i32 = arith.constant 12 : i32
    %23 = vector.broadcast %c12_i32 : i32 to vector<16x128xi32>
    %24 = arith.cmpi slt, %20, %23 : vector<16x128xi32>
    %25 = arith.andi %22, %24 : vector<16x128xi1>
    %cst_17 = arith.constant -1.000000e+01 : f32
    %cst_18 = arith.constant 2.000000e+00 : f32
    %26 = vector.broadcast %cst_17 : f32 to vector<16x128xf32>
    %27 = arith.maximumf %26, %19 : vector<16x128xf32>
    %28 = vector.broadcast %cst_18 : f32 to vector<16x128xf32>
    %29 = arith.minimumf %28, %27 : vector<16x128xf32>
    %30 = arith.select %25, %29, %19 : vector<16x128xi1>, vector<16x128xf32>
    %c0_19 = arith.constant 0 : index
    %c0_20 = arith.constant 0 : index
    %31 = vector.load %arg8[%c0_19, %c0_20] : memref<16x128xf32, #tpu.memory_space<vmem>>, vector<16x128xf32>
    tpu.vector_store %arg8[%c0_19, %c0_20], %30 {strides = array<i32>} : memref<16x128xf32, #tpu.memory_space<vmem>>, vector<16x128xf32>,
    return
  }
  func.func @transform_0(%arg0: i32) -> (i32, i32) {
    %c0_i32 = arith.constant 0 : i32
    %c0_i32_0 = arith.constant 0 : i32
    return %arg0, %c0_i32 : i32, i32
  }
  func.func @transform_1(%arg0: i32) -> (i32, i32) {
    %c0_i32 = arith.constant 0 : i32
    %c0_i32_0 = arith.constant 0 : i32
    %c0_i32_1 = arith.constant 0 : i32
    return %c0_i32, %c0_i32_0 : i32, i32
  }
  func.func @transform_2(%arg0: i32) -> (i32, i32) {
    %c0_i32 = arith.constant 0 : i32
    %c0_i32_0 = arith.constant 0 : i32
    %c0_i32_1 = arith.constant 0 : i32
    return %c0_i32, %c0_i32_0 : i32, i32
  }
  func.func @transform_3(%arg0: i32) -> (i32, i32) {
    %c0_i32 = arith.constant 0 : i32
    %c0_i32_0 = arith.constant 0 : i32
    %c0_i32_1 = arith.constant 0 : i32
    return %c0_i32, %c0_i32_0 : i32, i32
  }
  func.func @transform_4(%arg0: i32) -> (i32, i32) {
    %c0_i32 = arith.constant 0 : i32
    %c0_i32_0 = arith.constant 0 : i32
    %c0_i32_1 = arith.constant 0 : i32
    return %c0_i32, %c0_i32_0 : i32, i32
  }
  func.func @transform_5(%arg0: i32) -> (i32, i32) {
    %c0_i32 = arith.constant 0 : i32
    %c0_i32_0 = arith.constant 0 : i32
    %c0_i32_1 = arith.constant 0 : i32
    return %c0_i32, %c0_i32_0 : i32, i32
  }
  func.func @transform_6(%arg0: i32) -> (i32, i32) {
    %c0_i32 = arith.constant 0 : i32
    %c0_i32_0 = arith.constant 0 : i32
    %c0_i32_1 = arith.constant 0 : i32
    return %c0_i32, %c0_i32_0 : i32, i32
  }
  func.func @transform_7(%arg0: i32) -> (i32, i32) {
    %c0_i32 = arith.constant 0 : i32
    %c0_i32_0 = arith.constant 0 : i32
    return %arg0, %c0_i32 : i32, i32
  }
}

</mosaic_0001>

<llo_original>
// kernel: tpu_custom_call.1
$region0: #{tpu_custom_call.1}
  #allocation0 [shape = 'u32[]', space=smem, size = 0x4, offset = 0x4, fixed_abs, tag = 'smem constant byte address 0x4 - core index']
  #allocation1 [shape = 'u32[72,128]{1,0:T(1,128)}', space=vmem, size = 0x9000, scoped, tag = 'internal scratch']
  %s0 = inlined_call_operand.hbm [shape: f32[16,20], index: 0, kind: input, shape index: {}]
  %s1 = inlined_call_operand.hbm [shape: f32[20,128], index: 1, kind: input, shape index: {}]
  %s2 = inlined_call_operand.vmem [shape: f32[1,128], index: 2, kind: input, shape index: {}]
  %s3 = inlined_call_operand.hbm [shape: f32[128,128], index: 3, kind: input, shape index: {}]
  %s4 = inlined_call_operand.vmem [shape: f32[1,128], index: 4, kind: input, shape index: {}]
  %s5 = inlined_call_operand.hbm [shape: f32[128,128], index: 5, kind: input, shape index: {}]
  %s6 = inlined_call_operand.vmem [shape: f32[1,128], index: 6, kind: input, shape index: {}]
  %s7 = inlined_call_operand.hbm [shape: f32[16,128], index: 7, kind: output, shape index: {}]
  %s8 = sld [smem:[#allocation0]]
  $region54: #{tpu_custom_call.1} parent=0
    _
  %s10 = ssub.s32 1, %s8
  %s11 = scalar_select 0, %s10, %s8
  $region1: #{tpu_custom_call.1} parent=0
    #allocation2 [shape = 'u8[8192]{0}', space=vmem, size = 0x2000, scoped, tag = 'input window, operand 0, single buffered']
    #allocation3 [shape = 's32[1]{0}', space=sflag, size = 0x4, scoped, tag = 'scoped memory for tpu_custom_call.1']
    #allocation4 [shape = 's32[1]{0}', space=sflag, size = 0x4, scoped, tag = 'scoped memory for tpu_custom_call.1']
    #allocation5 [shape = 'u8[12288]{0}', space=vmem, size = 0x3000, scoped, tag = 'input window, operand 1, single buffered']
    #allocation6 [shape = 's32[1]{0}', space=sflag, size = 0x4, scoped, tag = 'scoped memory for tpu_custom_call.1']
    #allocation7 [shape = 'u8[65536]{0}', space=vmem, size = 0x10000, scoped, tag = 'input window, operand 3, single buffered']
    #allocation8 [shape = 'u8[65536]{0}', space=vmem, size = 0x10000, scoped, tag = 'input window, operand 5, single buffered']
    #allocation9 [shape = 's32[1]{0}', space=sflag, size = 0x4, scoped, tag = 'scoped memory for tpu_custom_call.1']
    #allocation10 [shape = 'u8[8192]{0}', space=vmem, size = 0x2000, scoped, tag = 'output window, operand 0, single buffered']
    %12 = vsyncpa [#allocation3], 0
    %13 = vsyncpa [#allocation6], 0
    %14 = vsyncpa [#allocation9], 0
    %15 = vsyncpa [#allocation4], 0
    // Predicated region
    $region2: #{tpu_custom_call.1} parent=1 // pred_check
      _
    $region3: #{tpu_custom_call.1} parent=1 // pred_check_branch
      %17 = sbr.rel (0) target = $region5
    $region4: #{tpu_custom_call.1} parent=1 // pred_region
      %19 = vsyncadd [#allocation3], 0
      %s20 = sshll.u32 %s0, 4
      %s21 = int_to_ptr.hbm [resolvable:$true] %s20
      %s22 = sshll.u32 [#allocation2], 4
      %s23 = int_to_ptr.vmem [resolvable:$true] %s22
      %28 = dma.hbm_to_vmem [thread:$0]  %s21, 256, %s23, [#allocation3], 128, 128, 8
    $region5: #{tpu_custom_call.1} parent=1 // pred_fallthru
      _
    // Predicated region
    $region6: #{tpu_custom_call.1} parent=1 // pred_check
      _
    $region7: #{tpu_custom_call.1} parent=1 // pred_check_branch
      %30 = sbr.rel (0) target = $region9
    $region8: #{tpu_custom_call.1} parent=1 // pred_region
      %32 = vsyncadd [#allocation6], 0
      %s33 = sshll.u32 %s1, 4
      %s34 = int_to_ptr.hbm [resolvable:$true] %s33
      %s35 = sshll.u32 [#allocation5], 4
      %s36 = int_to_ptr.vmem [resolvable:$true] %s35
      %41 = dma.hbm_to_vmem [thread:$0]  %s34, 384, %s36, [#allocation6], 128, 128, 8
    $region9: #{tpu_custom_call.1} parent=1 // pred_fallthru
      _
    // Predicated region
    $region10: #{tpu_custom_call.1} parent=1 // pred_check
      _
    $region11: #{tpu_custom_call.1} parent=1 // pred_check_branch
      %43 = sbr.rel (0) target = $region13
    $region12: #{tpu_custom_call.1} parent=1 // pred_region
      _
    $region13: #{tpu_custom_call.1} parent=1 // pred_fallthru
      _
    // Predicated region
    $region14: #{tpu_custom_call.1} parent=1 // pred_check
      _
    $region15: #{tpu_custom_call.1} parent=1 // pred_check_branch
      %45 = sbr.rel (0) target = $region17
    $region16: #{tpu_custom_call.1} parent=1 // pred_region
      %47 = vsyncadd [#allocation6], 0
      %s48 = sshll.u32 %s3, 4
      %s49 = int_to_ptr.hbm [resolvable:$true] %s48
      %s50 = sshll.u32 [#allocation7], 4
      %s51 = int_to_ptr.vmem [resolvable:$true] %s50
      %56 = dma.hbm_to_vmem [thread:$0]  %s49, 2048, %s51, [#allocation6], 128, 128, 8
    $region17: #{tpu_custom_call.1} parent=1 // pred_fallthru
      _
    // Predicated region
    $region18: #{tpu_custom_call.1} parent=1 // pred_check
      _
    $region19: #{tpu_custom_call.1} parent=1 // pred_check_branch
      %58 = sbr.rel (0) target = $region21
    $region20: #{tpu_custom_call.1} parent=1 // pred_region
      _
    $region21: #{tpu_custom_call.1} parent=1 // pred_fallthru
      _
    // Predicated region
    $region22: #{tpu_custom_call.1} parent=1 // pred_check
      _
    $region23: #{tpu_custom_call.1} parent=1 // pred_check_branch
      %60 = sbr.rel (0) target = $region25
    $region24: #{tpu_custom_call.1} parent=1 // pred_region
      %62 = vsyncadd [#allocation9], 0
      %s63 = sshll.u32 %s5, 4
      %s64 = int_to_ptr.hbm [resolvable:$true] %s63
      %s65 = sshll.u32 [#allocation8], 4
      %s66 = int_to_ptr.vmem [resolvable:$true] %s65
      %71 = dma.hbm_to_vmem [thread:$0]  %s64, 2048, %s66, [#allocation9], 128, 128, 8
    $region25: #{tpu_custom_call.1} parent=1 // pred_fallthru
      _
    // Predicated region
    $region26: #{tpu_custom_call.1} parent=1 // pred_check
      _
    $region27: #{tpu_custom_call.1} parent=1 // pred_check_branch
      %73 = sbr.rel (0) target = $region29
    $region28: #{tpu_custom_call.1} parent=1 // pred_region
      _
    $region29: #{tpu_custom_call.1} parent=1 // pred_fallthru
      _
    // Predicated region
    $region30: #{tpu_custom_call.1} parent=1 // pred_check
      _
    $region31: #{tpu_custom_call.1} parent=1 // pred_check_branch
      %75 = sbr.rel (0) target = $region33
    $region32: #{tpu_custom_call.1} parent=1 // pred_region
      %77 = dma.done [#allocation3], 256
    $region33: #{tpu_custom_call.1} parent=1 // pred_fallthru
      _
    // Predicated region
    $region34: #{tpu_custom_call.1} parent=1 // pred_check
      _
    $region35: #{tpu_custom_call.1} parent=1 // pred_check_branch
      %79 = sbr.rel (0) target = $region37
    $region36: #{tpu_custom_call.1} parent=1 // pred_region
      %81 = dma.done [#allocation6], 384
    $region37: #{tpu_custom_call.1} parent=1 // pred_fallthru
      _
    // Predicated region
    $region38: #{tpu_custom_call.1} parent=1 // pred_check
      _
    $region39: #{tpu_custom_call.1} parent=1 // pred_check_branch
      %83 = sbr.rel (0) target = $region41
    $region40: #{tpu_custom_call.1} parent=1 // pred_region
      %85 = dma.done [#allocation6], 2048
    $region41: #{tpu_custom_call.1} parent=1 // pred_fallthru
      _
    // Predicated region
    $region42: #{tpu_custom_call.1} parent=1 // pred_check
      _
    $region43: #{tpu_custom_call.1} parent=1 // pred_check_branch
      %87 = sbr.rel (0) target = $region45
    $region44: #{tpu_custom_call.1} parent=1 // pred_region
      %89 = dma.done [#allocation9], 2048
    $region45: #{tpu_custom_call.1} parent=1 // pred_fallthru
      _
    %v90 = vld [vmem:[#allocation2] sm:$0xff]
    %v91 = vld [vmem:[#allocation2 + $0x8] sm:$0xff]
    %v92 = vld [vmem:[#allocation5] sm:$0xff]
    %v93 = vld [vmem:[#allocation5 + $0x8] sm:$0xff]
    %v94 = vld [vmem:[#allocation5 + $0x10] sm:$0xf]
    %v95 = vld [vmem:[%s2] sm:$0x1]
    %v97 = vperm.slane %v95, 0
    %vm99 = vcmask 162816
    %v101 = vsel %vm99, %v90, 0
    %v104 = vsel %vm99, %v91, 0
    %vm106 = vcmask 1043456
    %v108 = vsel %vm106, %v94, 0
    %110 = vmatpush.msra.mxu0 0.0
    %111 = vmatpush.msra.mxu0 0.0
    %112 = vmatpush.msra.mxu0 0.0
    %113 = vmatpush.msra.mxu0 0.0
    %114 = vmatpush.msra.mxu0 0.0
    %115 = vmatpush.msra.mxu0 0.0
    %116 = vmatpush.msra.mxu0 0.0
    %117 = vmatpush.msra.mxu0 0.0
    %118 = vmatpush.msra.mxu0 0.0
    %119 = vmatpush.msra.mxu0 0.0
    %120 = vmatpush.msra.mxu0 0.0
    %121 = vmatpush.msra.mxu0 0.0
    %122 = vmatpush.msra.mxu0 0.0
    %123 = vmatpush.msra.mxu0 %v108
    %124 = vmatpush.msra.mxu0 %v93
    %125 = vmatpush.msra.mxu0 %v92
    %126 = vmatmul.f32.gmra.mxu0 %v101
    %v127 = vpop.f32.mrf.mxu0
    %v128 = vadd.f32 %v97, %v127
    %129 = vmatmul.f32.gmra.mxu0 %v104
    %v130 = vpop.f32.mrf.mxu0
    %v131 = vadd.f32 %v97, %v130
    %132 = vdwg.mxu0
    %v133 = vmax.f32 %v128, 0.0
    %v134 = vmax.f32 %v131, 0.0
    %v135 = vld [vmem:[#allocation7] sm:$0xff]
    %v136 = vld [vmem:[#allocation7 + $0x8] sm:$0xff]
    %v137 = vld [vmem:[#allocation7 + $0x10] sm:$0xff]
    %v138 = vld [vmem:[#allocation7 + $0x18] sm:$0xff]
    %v139 = vld [vmem:[#allocation7 + $0x20] sm:$0xff]
    %v140 = vld [vmem:[#allocation7 + $0x28] sm:$0xff]
    %v141 = vld [vmem:[#allocation7 + $0x30] sm:$0xff]
    %v142 = vld [vmem:[#allocation7 + $0x38] sm:$0xff]
    %v143 = vld [vmem:[#allocation7 + $0x40] sm:$0xff]
    %v144 = vld [vmem:[#allocation7 + $0x48] sm:$0xff]
    %v145 = vld [vmem:[#allocation7 + $0x50] sm:$0xff]
    %v146 = vld [vmem:[#allocation7 + $0x58] sm:$0xff]
    %v147 = vld [vmem:[#allocation7 + $0x60] sm:$0xff]
    %v148 = vld [vmem:[#allocation7 + $0x68] sm:$0xff]
    %v149 = vld [vmem:[#allocation7 + $0x70] sm:$0xff]
    %v150 = vld [vmem:[#allocation7 + $0x78] sm:$0xff]
    %v151 = vld [vmem:[%s4] sm:$0x1]
    %v153 = vperm.slane %v151, 0
    %155 = vmatpush.msra.mxu0 %v150
    %156 = vmatpush.msra.mxu0 %v149
    %157 = vmatpush.msra.mxu0 %v148
    %158 = vmatpush.msra.mxu0 %v147
    %159 = vmatpush.msra.mxu0 %v146
    %160 = vmatpush.msra.mxu0 %v145
    %161 = vmatpush.msra.mxu0 %v144
    %162 = vmatpush.msra.mxu0 %v143
    %163 = vmatpush.msra.mxu0 %v142
    %164 = vmatpush.msra.mxu0 %v141
    %165 = vmatpush.msra.mxu0 %v140
    %166 = vmatpush.msra.mxu0 %v139
    %167 = vmatpush.msra.mxu0 %v138
    %168 = vmatpush.msra.mxu0 %v137
    %169 = vmatpush.msra.mxu0 %v136
    %170 = vmatpush.msra.mxu0 %v135
    %171 = vmatmul.f32.gmra.mxu0 %v133
    %v172 = vpop.f32.mrf.mxu0
    %v173 = vadd.f32 %v153, %v172
    %174 = vmatmul.f32.gmra.mxu0 %v134
    %v175 = vpop.f32.mrf.mxu0
    %v176 = vadd.f32 %v153, %v175
    %177 = vdwg.mxu0
    %v178 = vmax.f32 %v173, 0.0
    %v179 = vmax.f32 %v176, 0.0
    %v180 = vld [vmem:[#allocation8] sm:$0xff]
    %v181 = vld [vmem:[#allocation8 + $0x8] sm:$0xff]
    %v182 = vld [vmem:[#allocation8 + $0x10] sm:$0xff]
    %v183 = vld [vmem:[#allocation8 + $0x18] sm:$0xff]
    %v184 = vld [vmem:[#allocation8 + $0x20] sm:$0xff]
    %v185 = vld [vmem:[#allocation8 + $0x28] sm:$0xff]
    %v186 = vld [vmem:[#allocation8 + $0x30] sm:$0xff]
    %v187 = vld [vmem:[#allocation8 + $0x38] sm:$0xff]
    %v188 = vld [vmem:[#allocation8 + $0x40] sm:$0xff]
    %v189 = vld [vmem:[#allocation8 + $0x48] sm:$0xff]
    %v190 = vld [vmem:[#allocation8 + $0x50] sm:$0xff]
    %v191 = vld [vmem:[#allocation8 + $0x58] sm:$0xff]
    %v192 = vld [vmem:[#allocation8 + $0x60] sm:$0xff]
    %v193 = vld [vmem:[#allocation8 + $0x68] sm:$0xff]
    %v194 = vld [vmem:[#allocation8 + $0x70] sm:$0xff]
    %v195 = vld [vmem:[#allocation8 + $0x78] sm:$0xff]
    %v196 = vld [vmem:[%s6] sm:$0x1]
    %v198 = vperm.slane %v196, 0
    %200 = vmatpush.msra.mxu0 %v195
    %201 = vmatpush.msra.mxu0 %v194
    %202 = vmatpush.msra.mxu0 %v193
    %203 = vmatpush.msra.mxu0 %v192
    %204 = vmatpush.msra.mxu0 %v191
    %205 = vmatpush.msra.mxu0 %v190
    %206 = vmatpush.msra.mxu0 %v189
    %207 = vmatpush.msra.mxu0 %v188
    %208 = vmatpush.msra.mxu0 %v187
    %209 = vmatpush.msra.mxu0 %v186
    %210 = vmatpush.msra.mxu0 %v185
    %211 = vmatpush.msra.mxu0 %v184
    %212 = vmatpush.msra.mxu0 %v183
    %213 = vmatpush.msra.mxu0 %v182
    %214 = vmatpush.msra.mxu0 %v181
    %215 = vmatpush.msra.mxu0 %v180
    %216 = vmatmul.f32.gmra.mxu0 %v178
    %v217 = vpop.f32.mrf.mxu0
    %v218 = vadd.f32 %v198, %v217
    %219 = vmatmul.f32.gmra.mxu0 %v179
    %v220 = vpop.f32.mrf.mxu0
    %v221 = vadd.f32 %v198, %v220
    %222 = vdwg.mxu0
    %v223 = vlaneseq
    %v224 = vand.u32 %v223, 127
    %vm225 = vcmp.ge.s32.totalorder %v224, 6
    %vm226 = vcmp.lt.s32.totalorder %v224, 12
    %vm227 = vmand %vm225, %vm226
    %v228 = vmax.f32 %v218, -10.0
    %v229 = vmax.f32 %v221, -10.0
    %v230 = vmin.f32 %v228, 2.0
    %v231 = vmin.f32 %v229, 2.0
    %v232 = vsel %vm227, %v230, %v218
    %v233 = vsel %vm227, %v231, %v221
    %234 = vst [vmem:[#allocation10] sm:$0xff] %v232
    %235 = vst [vmem:[#allocation10 + $0x8] sm:$0xff] %v233
    // Predicated region
    $region46: #{tpu_custom_call.1} parent=1 // pred_check
      _
    $region47: #{tpu_custom_call.1} parent=1 // pred_check_branch
      %237 = sbr.rel (0) target = $region49
    $region48: #{tpu_custom_call.1} parent=1 // pred_region
      %239 = vsyncadd [#allocation4], 0
      %s240 = sshll.u32 [#allocation10], 4
      %s241 = int_to_ptr.vmem [resolvable:$true] %s240
      %s242 = sshll.u32 %s7, 4
      %s243 = int_to_ptr.hbm [resolvable:$true] %s242
      %248 = dma.vmem_to_hbm [thread:$0]  %s241, 256, %s243, [#allocation4], 128, 128, 8
    $region49: #{tpu_custom_call.1} parent=1 // pred_fallthru
      _
    // Predicated region
    $region50: #{tpu_custom_call.1} parent=1 // pred_check
      _
    $region51: #{tpu_custom_call.1} parent=1 // pred_check_branch
      %250 = sbr.rel (0) target = $region53
    $region52: #{tpu_custom_call.1} parent=1 // pred_region
      %252 = dma.done [#allocation4], 256
    $region53: #{tpu_custom_call.1} parent=1 // pred_fallthru
      _
    %253 = vsyncpa [#allocation3], 1
    %254 = vsyncpa [#allocation6], 1
    %255 = vsyncpa [#allocation9], 1
    %256 = vsyncpa [#allocation4], 1

// kernel: tpu_custom_call.1
$region0: #{tpu_custom_call.1}
  #allocation0 [shape = 'u32[]', space=smem, size = 0x4, offset = 0x4, fixed_abs, tag = 'smem constant byte address 0x4 - core index']
  #allocation1 [shape = 'u32[72,128]{1,0:T(1,128)}', space=vmem, size = 0x9000, scoped, tag = 'internal scratch']
  %s0 = inlined_call_operand.hbm [shape: f32[16,20], index: 0, kind: input, shape index: {}]
  %s1 = inlined_call_operand.hbm [shape: f32[20,128], index: 1, kind: input, shape index: {}]
  %s2 = inlined_call_operand.vmem [shape: f32[1,128], index: 2, kind: input, shape index: {}]
  %s3 = inlined_call_operand.hbm [shape: f32[128,128], index: 3, kind: input, shape index: {}]
  %s4 = inlined_call_operand.vmem [shape: f32[1,128], index: 4, kind: input, shape index: {}]
  %s5 = inlined_call_operand.hbm [shape: f32[128,128], index: 5, kind: input, shape index: {}]
  %s6 = inlined_call_operand.vmem [shape: f32[1,128], index: 6, kind: input, shape index: {}]
  %s7 = inlined_call_operand.hbm [shape: f32[16,128], index: 7, kind: output, shape index: {}]
  %s8 = sld [smem:[#allocation0]]
  $region54: #{tpu_custom_call.1} parent=0
    _
  %s10 = ssub.s32 1, %s8
  %s11 = scalar_select 0, %s10, %s8
  $region1: #{tpu_custom_call.1} parent=0
    #allocation2 [shape = 'u8[8192]{0}', space=vmem, size = 0x2000, scoped, tag = 'input window, operand 0, single buffered']
    #allocation3 [shape = 's32[1]{0}', space=sflag, size = 0x4, scoped, tag = 'scoped memory for tpu_custom_call.1']
    #allocation4 [shape = 's32[1]{0}', space=sflag, size = 0x4, scoped, tag = 'scoped memory for tpu_custom_call.1']
    #allocation5 [shape = 'u8[12288]{0}', space=vmem, size = 0x3000, scoped, tag = 'input window, operand 1, single buffered']
    #allocation6 [shape = 's32[1]{0}', space=sflag, size = 0x4, scoped, tag = 'scoped memory for tpu_custom_call.1']
    #allocation7 [shape = 'u8[65536]{0}', space=vmem, size = 0x10000, scoped, tag = 'input window, operand 3, single buffered']
    #allocation8 [shape = 'u8[65536]{0}', space=vmem, size = 0x10000, scoped, tag = 'input window, operand 5, single buffered']
    #allocation9 [shape = 's32[1]{0}', space=sflag, size = 0x4, scoped, tag = 'scoped memory for tpu_custom_call.1']
    #allocation10 [shape = 'u8[8192]{0}', space=vmem, size = 0x2000, scoped, tag = 'output window, operand 0, single buffered']
    %12 = vsyncpa [#allocation3], 0
    %13 = vsyncpa [#allocation6], 0
    %14 = vsyncpa [#allocation9], 0
    %15 = vsyncpa [#allocation4], 0
    // Predicated region
    $region2: #{tpu_custom_call.1} parent=1 // pred_check
      _
    $region3: #{tpu_custom_call.1} parent=1 // pred_check_branch
      %17 = sbr.rel (0) target = $region5
    $region4: #{tpu_custom_call.1} parent=1 // pred_region
      %19 = vsyncadd [#allocation3], 0
      %s20 = sshll.u32 %s0, 4
      %s21 = int_to_ptr.hbm [resolvable:$true] %s20
      %s22 = sshll.u32 [#allocation2], 4
      %s23 = int_to_ptr.vmem [resolvable:$true] %s22
      %28 = dma.hbm_to_vmem [thread:$0]  %s21, 256, %s23, [#allocation3], 128, 128, 8
    $region5: #{tpu_custom_call.1} parent=1 // pred_fallthru
      _
    // Predicated region
    $region6: #{tpu_custom_call.1} parent=1 // pred_check
      _
    $region7: #{tpu_custom_call.1} parent=1 // pred_check_branch
      %30 = sbr.rel (0) target = $region9
    $region8: #{tpu_custom_call.1} parent=1 // pred_region
      %32 = vsyncadd [#allocation6], 0
      %s33 = sshll.u32 %s1, 4
      %s34 = int_to_ptr.hbm [resolvable:$true] %s33
      %s35 = sshll.u32 [#allocation5], 4
      %s36 = int_to_ptr.vmem [resolvable:$true] %s35
      %41 = dma.hbm_to_vmem [thread:$0]  %s34, 384, %s36, [#allocation6], 128, 128, 8
    $region9: #{tpu_custom_call.1} parent=1 // pred_fallthru
      _
    // Predicated region
    $region10: #{tpu_custom_call.1} parent=1 // pred_check
      _
    $region11: #{tpu_custom_call.1} parent=1 // pred_check_branch
      %43 = sbr.rel (0) target = $region13
    $region12: #{tpu_custom_call.1} parent=1 // pred_region
      _
    $region13: #{tpu_custom_call.1} parent=1 // pred_fallthru
      _
    // Predicated region
    $region14: #{tpu_custom_call.1} parent=1 // pred_check
      _
    $region15: #{tpu_custom_call.1} parent=1 // pred_check_branch
      %45 = sbr.rel (0) target = $region17
    $region16: #{tpu_custom_call.1} parent=1 // pred_region
      %47 = vsyncadd [#allocation6], 0
      %s48 = sshll.u32 %s3, 4
      %s49 = int_to_ptr.hbm [resolvable:$true] %s48
      %s50 = sshll.u32 [#allocation7], 4
      %s51 = int_to_ptr.vmem [resolvable:$true] %s50
      %56 = dma.hbm_to_vmem [thread:$0]  %s49, 2048, %s51, [#allocation6], 128, 128, 8
    $region17: #{tpu_custom_call.1} parent=1 // pred_fallthru
      _
    // Predicated region
    $region18: #{tpu_custom_call.1} parent=1 // pred_check
      _
    $region19: #{tpu_custom_call.1} parent=1 // pred_check_branch
      %58 = sbr.rel (0) target = $region21
    $region20: #{tpu_custom_call.1} parent=1 // pred_region
      _
    $region21: #{tpu_custom_call.1} parent=1 // pred_fallthru
      _
    // Predicated region
    $region22: #{tpu_custom_call.1} parent=1 // pred_check
      _
    $region23: #{tpu_custom_call.1} parent=1 // pred_check_branch
      %60 = sbr.rel (0) target = $region25
    $region24: #{tpu_custom_call.1} parent=1 // pred_region
      %62 = vsyncadd [#allocation9], 0
      %s63 = sshll.u32 %s5, 4
      %s64 = int_to_ptr.hbm [resolvable:$true] %s63
      %s65 = sshll.u32 [#allocation8], 4
      %s66 = int_to_ptr.vmem [resolvable:$true] %s65
      %71 = dma.hbm_to_vmem [thread:$0]  %s64, 2048, %s66, [#allocation9], 128, 128, 8
    $region25: #{tpu_custom_call.1} parent=1 // pred_fallthru
      _
    // Predicated region
    $region26: #{tpu_custom_call.1} parent=1 // pred_check
      _
    $region27: #{tpu_custom_call.1} parent=1 // pred_check_branch
      %73 = sbr.rel (0) target = $region29
    $region28: #{tpu_custom_call.1} parent=1 // pred_region
      _
    $region29: #{tpu_custom_call.1} parent=1 // pred_fallthru
      _
    // Predicated region
    $region30: #{tpu_custom_call.1} parent=1 // pred_check
      _
    $region31: #{tpu_custom_call.1} parent=1 // pred_check_branch
      %75 = sbr.rel (0) target = $region33
    $region32: #{tpu_custom_call.1} parent=1 // pred_region
      %77 = dma.done [#allocation3], 256
    $region33: #{tpu_custom_call.1} parent=1 // pred_fallthru
      _
    // Predicated region
    $region34: #{tpu_custom_call.1} parent=1 // pred_check
      _
    $region35: #{tpu_custom_call.1} parent=1 // pred_check_branch
      %79 = sbr.rel (0) target = $region37
    $region36: #{tpu_custom_call.1} parent=1 // pred_region
      %81 = dma.done [#allocation6], 384
    $region37: #{tpu_custom_call.1} parent=1 // pred_fallthru
      _
    // Predicated region
    $region38: #{tpu_custom_call.1} parent=1 // pred_check
      _
    $region39: #{tpu_custom_call.1} parent=1 // pred_check_branch
      %83 = sbr.rel (0) target = $region41
    $region40: #{tpu_custom_call.1} parent=1 // pred_region
      %85 = dma.done [#allocation6], 2048
    $region41: #{tpu_custom_call.1} parent=1 // pred_fallthru
      _
    // Predicated region
    $region42: #{tpu_custom_call.1} parent=1 // pred_check
      _
    $region43: #{tpu_custom_call.1} parent=1 // pred_check_branch
      %87 = sbr.rel (0) target = $region45
    $region44: #{tpu_custom_call.1} parent=1 // pred_region
      %89 = dma.done [#allocation9], 2048
    $region45: #{tpu_custom_call.1} parent=1 // pred_fallthru
      _
    %v90 = vld [vmem:[#allocation2] sm:$0xff]
    %v91 = vld [vmem:[#allocation2 + $0x8] sm:$0xff]
    %v92 = vld [vmem:[#allocation5] sm:$0xff]
    %v93 = vld [vmem:[#allocation5 + $0x8] sm:$0xff]
    %v94 = vld [vmem:[#allocation5 + $0x10] sm:$0xf]
    %v95 = vld [vmem:[%s2] sm:$0x1]
    %v97 = vperm.slane %v95, 0
    %vm99 = vcmask 162816
    %v101 = vsel %vm99, %v90, 0
    %v104 = vsel %vm99, %v91, 0
    %vm106 = vcmask 1043456
    %v108 = vsel %vm106, %v94, 0
    %110 = vmatpush.msra.mxu0 0.0
    %111 = vmatpush.msra.mxu0 0.0
    %112 = vmatpush.msra.mxu0 0.0
    %113 = vmatpush.msra.mxu0 0.0
    %114 = vmatpush.msra.mxu0 0.0
    %115 = vmatpush.msra.mxu0 0.0
    %116 = vmatpush.msra.mxu0 0.0
    %117 = vmatpush.msra.mxu0 0.0
    %118 = vmatpush.msra.mxu0 0.0
    %119 = vmatpush.msra.mxu0 0.0
    %120 = vmatpush.msra.mxu0 0.0
    %121 = vmatpush.msra.mxu0 0.0
    %122 = vmatpush.msra.mxu0 0.0
    %123 = vmatpush.msra.mxu0 %v108
    %124 = vmatpush.msra.mxu0 %v93
    %125 = vmatpush.msra.mxu0 %v92
    %126 = vmatmul.f32.gmra.mxu0 %v101
    %v127 = vpop.f32.mrf.mxu0
    %v128 = vadd.f32 %v97, %v127
    %129 = vmatmul.f32.gmra.mxu0 %v104
    %v130 = vpop.f32.mrf.mxu0
    %v131 = vadd.f32 %v97, %v130
    %132 = vdwg.mxu0
    %v133 = vmax.f32 %v128, 0.0
    %v134 = vmax.f32 %v131, 0.0
    %v135 = vld [vmem:[#allocation7] sm:$0xff]
    %v136 = vld [vmem:[#allocation7 + $0x8] sm:$0xff]
    %v137 = vld [vmem:[#allocation7 + $0x10] sm:$0xff]
    %v138 = vld [vmem:[#allocation7 + $0x18] sm:$0xff]
    %v139 = vld [vmem:[#allocation7 + $0x20] sm:$0xff]
    %v140 = vld [vmem:[#allocation7 + $0x28] sm:$0xff]
    %v141 = vld [vmem:[#allocation7 + $0x30] sm:$0xff]
    %v142 = vld [vmem:[#allocation7 + $0x38] sm:$0xff]
    %v143 = vld [vmem:[#allocation7 + $0x40] sm:$0xff]
    %v144 = vld [vmem:[#allocation7 + $0x48] sm:$0xff]
    %v145 = vld [vmem:[#allocation7 + $0x50] sm:$0xff]
    %v146 = vld [vmem:[#allocation7 + $0x58] sm:$0xff]
    %v147 = vld [vmem:[#allocation7 + $0x60] sm:$0xff]
    %v148 = vld [vmem:[#allocation7 + $0x68] sm:$0xff]
    %v149 = vld [vmem:[#allocation7 + $0x70] sm:$0xff]
    %v150 = vld [vmem:[#allocation7 + $0x78] sm:$0xff]
    %v151 = vld [vmem:[%s4] sm:$0x1]
    %v153 = vperm.slane %v151, 0
    %155 = vmatpush.msra.mxu0 %v150
    %156 = vmatpush.msra.mxu0 %v149
    %157 = vmatpush.msra.mxu0 %v148
    %158 = vmatpush.msra.mxu0 %v147
    %159 = vmatpush.msra.mxu0 %v146
    %160 = vmatpush.msra.mxu0 %v145
    %161 = vmatpush.msra.mxu0 %v144
    %162 = vmatpush.msra.mxu0 %v143
    %163 = vmatpush.msra.mxu0 %v142
    %164 = vmatpush.msra.mxu0 %v141
    %165 = vmatpush.msra.mxu0 %v140
    %166 = vmatpush.msra.mxu0 %v139
    %167 = vmatpush.msra.mxu0 %v138
    %168 = vmatpush.msra.mxu0 %v137
    %169 = vmatpush.msra.mxu0 %v136
    %170 = vmatpush.msra.mxu0 %v135
    %171 = vmatmul.f32.gmra.mxu0 %v133
    %v172 = vpop.f32.mrf.mxu0
    %v173 = vadd.f32 %v153, %v172
    %174 = vmatmul.f32.gmra.mxu0 %v134
    %v175 = vpop.f32.mrf.mxu0
    %v176 = vadd.f32 %v153, %v175
    %177 = vdwg.mxu0
    %v178 = vmax.f32 %v173, 0.0
    %v179 = vmax.f32 %v176, 0.0
    %v180 = vld [vmem:[#allocation8] sm:$0xff]
    %v181 = vld [vmem:[#allocation8 + $0x8] sm:$0xff]
    %v182 = vld [vmem:[#allocation8 + $0x10] sm:$0xff]
    %v183 = vld [vmem:[#allocation8 + $0x18] sm:$0xff]
    %v184 = vld [vmem:[#allocation8 + $0x20] sm:$0xff]
    %v185 = vld [vmem:[#allocation8 + $0x28] sm:$0xff]
    %v186 = vld [vmem:[#allocation8 + $0x30] sm:$0xff]
    %v187 = vld [vmem:[#allocation8 + $0x38] sm:$0xff]
    %v188 = vld [vmem:[#allocation8 + $0x40] sm:$0xff]
    %v189 = vld [vmem:[#allocation8 + $0x48] sm:$0xff]
    %v190 = vld [vmem:[#allocation8 + $0x50] sm:$0xff]
    %v191 = vld [vmem:[#allocation8 + $0x58] sm:$0xff]
    %v192 = vld [vmem:[#allocation8 + $0x60] sm:$0xff]
    %v193 = vld [vmem:[#allocation8 + $0x68] sm:$0xff]
    %v194 = vld [vmem:[#allocation8 + $0x70] sm:$0xff]
    %v195 = vld [vmem:[#allocation8 + $0x78] sm:$0xff]
    %v196 = vld [vmem:[%s6] sm:$0x1]
    %v198 = vperm.slane %v196, 0
    %200 = vmatpush.msra.mxu0 %v195
    %201 = vmatpush.msra.mxu0 %v194
    %202 = vmatpush.msra.mxu0 %v193
    %203 = vmatpush.msra.mxu0 %v192
    %204 = vmatpush.msra.mxu0 %v191
    %205 = vmatpush.msra.mxu0 %v190
    %206 = vmatpush.msra.mxu0 %v189
    %207 = vmatpush.msra.mxu0 %v188
    %208 = vmatpush.msra.mxu0 %v187
    %209 = vmatpush.msra.mxu0 %v186
    %210 = vmatpush.msra.mxu0 %v185
    %211 = vmatpush.msra.mxu0 %v184
    %212 = vmatpush.msra.mxu0 %v183
    %213 = vmatpush.msra.mxu0 %v182
    %214 = vmatpush.msra.mxu0 %v181
    %215 = vmatpush.msra.mxu0 %v180
    %216 = vmatmul.f32.gmra.mxu0 %v178
    %v217 = vpop.f32.mrf.mxu0
    %v218 = vadd.f32 %v198, %v217
    %219 = vmatmul.f32.gmra.mxu0 %v179
    %v220 = vpop.f32.mrf.mxu0
    %v221 = vadd.f32 %v198, %v220
    %222 = vdwg.mxu0
    %v223 = vlaneseq
    %v224 = vand.u32 %v223, 127
    %vm225 = vcmp.ge.s32.totalorder %v224, 6
    %vm226 = vcmp.lt.s32.totalorder %v224, 12
    %vm227 = vmand %vm225, %vm226
    %v228 = vmax.f32 %v218, -10.0
    %v229 = vmax.f32 %v221, -10.0
    %v230 = vmin.f32 %v228, 2.0
    %v231 = vmin.f32 %v229, 2.0
    %v232 = vsel %vm227, %v230, %v218
    %v233 = vsel %vm227, %v231, %v221
    %234 = vst [vmem:[#allocation10] sm:$0xff] %v232
    %235 = vst [vmem:[#allocation10 + $0x8] sm:$0xff] %v233
    // Predicated region
    $region46: #{tpu_custom_call.1} parent=1 // pred_check
      _
    $region47: #{tpu_custom_call.1} parent=1 // pred_check_branch
      %237 = sbr.rel (0) target = $region49
    $region48: #{tpu_custom_call.1} parent=1 // pred_region
      %239 = vsyncadd [#allocation4], 0
      %s240 = sshll.u32 [#allocation10], 4
      %s241 = int_to_ptr.vmem [resolvable:$true] %s240
      %s242 = sshll.u32 %s7, 4
      %s243 = int_to_ptr.hbm [resolvable:$true] %s242
      %248 = dma.vmem_to_hbm [thread:$0]  %s241, 256, %s243, [#allocation4], 128, 128, 8
    $region49: #{tpu_custom_call.1} parent=1 // pred_fallthru
      _
    // Predicated region
    $region50: #{tpu_custom_call.1} parent=1 // pred_check
      _
    $region51: #{tpu_custom_call.1} parent=1 // pred_check_branch
      %250 = sbr.rel (0) target = $region53
    $region52: #{tpu_custom_call.1} parent=1 // pred_region
      %252 = dma.done [#allocation4], 256
    $region53: #{tpu_custom_call.1} parent=1 // pred_fallthru
      _
    %253 = vsyncpa [#allocation3], 1
    %254 = vsyncpa [#allocation6], 1
    %255 = vsyncpa [#allocation9], 1
    %256 = vsyncpa [#allocation4], 1

</llo_original>
